<compile_context>
chip_gen: v6e
topology: v6e:2x2x1
jax: 0.10.0
libtpu: 0.0.40
codegen_flags: <defaults>
</compile_context>

<pallas_src>
import jax
import jax.numpy as jnp
from jax.experimental import pallas as pl
from jax.experimental.pallas import tpu as pltpu


def _round_up(x, m):
    return ((x + m - 1) // m) * m


def _mlp_kernel(x_ref, w1_ref, b1_ref, w2_ref, b2_ref, w3_ref, b3_ref, o_ref):
    # Layer 1: Linear + ReLU (bf16 MXU matmul, f32 accumulate)
    x = x_ref[...].astype(jnp.bfloat16)
    h1 = jnp.dot(x, w1_ref[...], preferred_element_type=jnp.float32)
    h1 = jnp.maximum(h1 + b1_ref[...], 0.0)
    # Layer 2: Linear + ReLU
    h2 = jnp.dot(h1.astype(jnp.bfloat16), w2_ref[...],
                 preferred_element_type=jnp.float32)
    h2 = jnp.maximum(h2 + b2_ref[...], 0.0)
    # Layer 3: Linear (no activation)
    h3 = jnp.dot(h2.astype(jnp.bfloat16), w3_ref[...],
                 preferred_element_type=jnp.float32)
    o_ref[...] = (h3 + b3_ref[...]).astype(o_ref.dtype)


def init_params(key, in_size=16, in_chan=1, latent_dim=1):
    """PyTorch-matching parameter init (kaiming-normal weights, uniform biases).
    Stored transposed (in, out), f32, unpadded."""
    d_in = in_size * in_size * in_chan
    d_h1 = 500 * in_chan
    d_h2 = 100 * in_chan
    keys = jax.random.split(key, 6)

    def kaiming(k, fan_in, fan_out):
        std = jnp.sqrt(2.0 / fan_in)
        return (jax.random.normal(k, (fan_out, fan_in), jnp.float32) * std).T

    def bias(k, fan_in, fan_out):
        bound = 1.0 / jnp.sqrt(fan_in)
        return jax.random.uniform(k, (1, fan_out), jnp.float32,
                                  minval=-bound, maxval=bound)

    return {
        "w1t": kaiming(keys[0], d_in, d_h1), "b1": bias(keys[1], d_in, d_h1),
        "w2t": kaiming(keys[2], d_h1, d_h2), "b2": bias(keys[3], d_h1, d_h2),
        "w3t": kaiming(keys[4], d_h2, latent_dim), "b3": bias(keys[5], d_h2, latent_dim),
    }


def prepare_params(params):
    """Pad all feature dims to multiples of 128 and cast weights to bf16.
    Pad rows/cols of the weights and pad entries of the biases are exactly zero,
    so the valid output region is unchanged (ReLU(0) = 0)."""
    w1t, b1 = params["w1t"], params["b1"]
    w2t, b2 = params["w2t"], params["b2"]
    w3t, b3 = params["w3t"], params["b3"]

    d_in, h1 = w1t.shape
    _, h2 = w2t.shape
    _, latent = w3t.shape
    d_in_p, h1_p = _round_up(d_in, 128), _round_up(h1, 128)
    h2_p, lat_p = _round_up(h2, 128), _round_up(latent, 128)

    def pad(a, shape, dtype):
        out = jnp.zeros(shape, dtype)
        return out.at[: a.shape[0], : a.shape[1]].set(a.astype(dtype))

    return {
        "w1t": pad(w1t, (d_in_p, h1_p), jnp.bfloat16),
        "b1": pad(b1, (1, h1_p), jnp.float32),
        "w2t": pad(w2t, (h1_p, h2_p), jnp.bfloat16),
        "b2": pad(b2, (1, h2_p), jnp.float32),
        "w3t": pad(w3t, (h2_p, lat_p), jnp.bfloat16),
        "b3": pad(b3, (1, lat_p), jnp.float32),
        "dims": (d_in, latent, d_in_p, lat_p),
    }


def encoder_mlp_forward(x, kparams, *, tb_target=128):
    """x: (B, C, H, W) float32.  kparams: output of prepare_params()."""
    b = x.shape[0]
    d_in, latent, d_in_p, lat_p = kparams["dims"]

    x_flat = x.reshape(b, -1)  # identical to torch x.reshape(B, -1)
    assert x_flat.shape[1] == d_in, (x_flat.shape, d_in)

    # Batch tile: multiple of 8 (f32 sublane); 128 fills the MXU on all
    # generations without inflating the resident (TB, 512) h1 intermediate.
    tb = min(tb_target, _round_up(b, 8))
    b_pad = _round_up(b, tb)

    # Zero-pad batch tail + input features (zero rows of w1t keep it exact).
    x_pad = jnp.zeros((b_pad, d_in_p), jnp.float32)
    x_pad = x_pad.at[:b, :d_in].set(x_flat)

    w1t, b1 = kparams["w1t"], kparams["b1"]
    w2t, b2 = kparams["w2t"], kparams["b2"]
    w3t, b3 = kparams["w3t"], kparams["b3"]
    h1_p, h2_p = w1t.shape[1], w2t.shape[1]

    grid = (b_pad // tb,)
    resident = lambda arr: pl.BlockSpec(arr.shape, lambda i: (0, 0))

    flops = 2 * b_pad * (d_in_p * h1_p + h1_p * h2_p + h2_p * lat_p)
    bytes_accessed = (
        x_pad.size * 4
        + (w1t.size + w2t.size + w3t.size) * 2
        + (b1.size + b2.size + b3.size) * 4
        + b_pad * lat_p * 4
    )

    out = pl.pallas_call(
        _mlp_kernel,
        out_shape=jax.ShapeDtypeStruct((b_pad, lat_p), jnp.float32),
        grid=grid,
        in_specs=[
            pl.BlockSpec((tb, d_in_p), lambda i: (i, 0)),
            resident(w1t), resident(b1),
            resident(w2t), resident(b2),
            resident(w3t), resident(b3),
        ],
        out_specs=pl.BlockSpec((tb, lat_p), lambda i: (i, 0)),
        compiler_params=pltpu.CompilerParams(
            dimension_semantics=("parallel",)),
        cost_estimate=pl.CostEstimate(
            flops=flops, transcendentals=0, bytes_accessed=bytes_accessed),
    )(x_pad, w1t, b1, w2t, b2, w3t, b3)

    return out[:b, :latent]


def reference_forward(x, params):
    """Pure-JAX f32 reference of the PyTorch forward."""
    xf = x.reshape(x.shape[0], -1)
    h = jnp.maximum(xf @ params["w1t"] + params["b1"], 0.0)
    h = jnp.maximum(h @ params["w2t"] + params["b2"], 0.0)
    return h @ params["w3t"] + params["b3"]


def reference_forward_bf16(x, params):
    """Reference with the same bf16-input / f32-accumulate math as the kernel."""
    bf16, f32 = jnp.bfloat16, jnp.float32
    xf = x.reshape(x.shape[0], -1)
    h = jnp.dot(xf.astype(bf16), params["w1t"].astype(bf16),
                preferred_element_type=f32) + params["b1"]
    h = jnp.maximum(h, 0.0)
    h = jnp.dot(h.astype(bf16), params["w2t"].astype(bf16),
                preferred_element_type=f32) + params["b2"]
    h = jnp.maximum(h, 0.0)
    return jnp.dot(h.astype(bf16), params["w3t"].astype(bf16),
                   preferred_element_type=f32) + params["b3"]


if __name__ == "__main__":
    # Small shapes consistent with the module: in_size=16, in_chan=1, latent_dim=4.
    B, C, H, W = 2, 1, 16, 16
    LATENT = 4

    key = jax.random.PRNGKey(0)
    kx, kp = jax.random.split(key)
    x = jax.random.normal(kx, (B, C, H, W), jnp.float32)

    params = init_params(kp, in_size=H, in_chan=C, latent_dim=LATENT)
    kparams = prepare_params(params)

    out = encoder_mlp_forward(x, kparams)
    out = jax.block_until_ready(out)

    assert out.shape == (B, LATENT), out.shape
    # Tight check vs a reference doing the identical bf16/f32 math.
    ref_bf16 = reference_forward_bf16(x, params)
    assert jnp.allclose(out, ref_bf16, atol=2e-3, rtol=2e-3), "mismatch vs bf16 reference"
    # Looser sanity check vs the full-f32 PyTorch-equivalent forward.
    ref_f32 = reference_forward(x, params)
    assert jnp.allclose(out, ref_f32, atol=5e-2, rtol=5e-2), "mismatch vs f32 reference"

    print("KERNEL_OK")
</pallas_src>

<mosaic_0001>
module attributes {stable_mosaic.version = 11 : i64} {
  func.func @_mlp_kernel(%arg0: i32, %arg1: memref<8x256xf32, #tpu.memory_space<vmem>>, %arg2: memref<256x512xbf16, #tpu.memory_space<vmem>>, %arg3: memref<1x512xf32, #tpu.memory_space<vmem>>, %arg4: memref<512x128xbf16, #tpu.memory_space<vmem>>, %arg5: memref<1x128xf32, #tpu.memory_space<vmem>>, %arg6: memref<128x128xbf16, #tpu.memory_space<vmem>>, %arg7: memref<1x128xf32, #tpu.memory_space<vmem>>, %arg8: memref<8x128xf32, #tpu.memory_space<vmem>>) attributes {dimension_semantics = [#tpu.dimension_semantics<parallel>], iteration_bounds = array<i64: 1>, scalar_prefetch = 0 : i64, scratch_operands = 0 : i64, tpu.core_type = #tpu.core_type<tc>, window_params = [{transform_indices = @transform_0, window_bounds = array<i64: 8, 256>}, {pipeline_mode = #tpu.pipeline_mode<synchronous>, transform_indices = @transform_1, window_bounds = array<i64: 256, 512>}, {pipeline_mode = #tpu.pipeline_mode<synchronous>, transform_indices = @transform_2, window_bounds = array<i64: 1, 512>}, {pipeline_mode = #tpu.pipeline_mode<synchronous>, transform_indices = @transform_3, window_bounds = array<i64: 512, 128>}, {pipeline_mode = #tpu.pipeline_mode<synchronous>, transform_indices = @transform_4, window_bounds = array<i64: 1, 128>}, {pipeline_mode = #tpu.pipeline_mode<synchronous>, transform_indices = @transform_5, window_bounds = array<i64: 128, 128>}, {pipeline_mode = #tpu.pipeline_mode<synchronous>, transform_indices = @transform_6, window_bounds = array<i64: 1, 128>}, {transform_indices = @transform_7, window_bounds = array<i64: 8, 128>}]} {
    %c0 = arith.constant 0 : index
    %c0_0 = arith.constant 0 : index
    %0 = vector.load %arg1[%c0, %c0_0] : memref<8x256xf32, #tpu.memory_space<vmem>>, vector<8x256xf32>
    %1 = arith.truncf %0 : vector<8x256xf32> to vector<8x256xbf16>
    %c0_1 = arith.constant 0 : index
    %c0_2 = arith.constant 0 : index
    %2 = vector.load %arg2[%c0_1, %c0_2] : memref<256x512xbf16, #tpu.memory_space<vmem>>, vector<256x512xbf16>
    %cst = arith.constant dense<0.000000e+00> : vector<8x512xf32>
    %3 = tpu.matmul %1, %2, %cst {dimension_numbers = #tpu.dot_dimension_numbers<[1], [0], [0], [1], [0, 0, 1, 1], [], []>} : vector<8x256xbf16>, vector<256x512xbf16>, vector<8x512xf32> -> vector<8x512xf32>
    %c0_3 = arith.constant 0 : index
    %c0_4 = arith.constant 0 : index
    %4 = vector.load %arg3[%c0_3, %c0_4] : memref<1x512xf32, #tpu.memory_space<vmem>>, vector<1x512xf32>
    %5 = vector.broadcast %4 : vector<1x512xf32> to vector<8x512xf32>
    %6 = arith.addf %3, %5 : vector<8x512xf32>
    %cst_5 = arith.constant 0.000000e+00 : f32
    %7 = vector.broadcast %cst_5 : f32 to vector<8x512xf32>
    %8 = arith.maximumf %6, %7 : vector<8x512xf32>
    %9 = arith.truncf %8 : vector<8x512xf32> to vector<8x512xbf16>
    %c0_6 = arith.constant 0 : index
    %c0_7 = arith.constant 0 : index
    %10 = vector.load %arg4[%c0_6, %c0_7] : memref<512x128xbf16, #tpu.memory_space<vmem>>, vector<512x128xbf16>
    %cst_8 = arith.constant dense<0.000000e+00> : vector<8x128xf32>
    %11 = tpu.matmul %9, %10, %cst_8 {dimension_numbers = #tpu.dot_dimension_numbers<[1], [0], [0], [1], [0, 0, 1, 1], [], []>} : vector<8x512xbf16>, vector<512x128xbf16>, vector<8x128xf32> -> vector<8x128xf32>
    %c0_9 = arith.constant 0 : index
    %c0_10 = arith.constant 0 : index
    %12 = vector.load %arg5[%c0_9, %c0_10] : memref<1x128xf32, #tpu.memory_space<vmem>>, vector<1x128xf32>
    %13 = vector.broadcast %12 : vector<1x128xf32> to vector<8x128xf32>
    %14 = arith.addf %11, %13 : vector<8x128xf32>
    %cst_11 = arith.constant 0.000000e+00 : f32
    %15 = vector.broadcast %cst_11 : f32 to vector<8x128xf32>
    %16 = arith.maximumf %14, %15 : vector<8x128xf32>
    %17 = arith.truncf %16 : vector<8x128xf32> to vector<8x128xbf16>
    %c0_12 = arith.constant 0 : index
    %c0_13 = arith.constant 0 : index
    %18 = vector.load %arg6[%c0_12, %c0_13] : memref<128x128xbf16, #tpu.memory_space<vmem>>, vector<128x128xbf16>
    %cst_14 = arith.constant dense<0.000000e+00> : vector<8x128xf32>
    %19 = tpu.matmul %17, %18, %cst_14 {dimension_numbers = #tpu.dot_dimension_numbers<[1], [0], [0], [1], [0, 0, 1, 1], [], []>} : vector<8x128xbf16>, vector<128x128xbf16>, vector<8x128xf32> -> vector<8x128xf32>
    %c0_15 = arith.constant 0 : index
    %c0_16 = arith.constant 0 : index
    %20 = vector.load %arg7[%c0_15, %c0_16] : memref<1x128xf32, #tpu.memory_space<vmem>>, vector<1x128xf32>
    %21 = vector.broadcast %20 : vector<1x128xf32> to vector<8x128xf32>
    %22 = arith.addf %19, %21 : vector<8x128xf32>
    %c0_17 = arith.constant 0 : index
    %c0_18 = arith.constant 0 : index
    %23 = vector.load %arg8[%c0_17, %c0_18] : memref<8x128xf32, #tpu.memory_space<vmem>>, vector<8x128xf32>
    tpu.vector_store %arg8[%c0_17, %c0_18], %22 {strides = array<i32>} : memref<8x128xf32, #tpu.memory_space<vmem>>, vector<8x128xf32>,
    return
  }
  func.func @transform_0(%arg0: i32) -> (i32, i32) {
    %c0_i32 = arith.constant 0 : i32
    %c0_i32_0 = arith.constant 0 : i32
    return %arg0, %c0_i32 : i32, i32
  }
  func.func @transform_1(%arg0: i32) -> (i32, i32) {
    %c0_i32 = arith.constant 0 : i32
    %c0_i32_0 = arith.constant 0 : i32
    %c0_i32_1 = arith.constant 0 : i32
    return %c0_i32, %c0_i32_0 : i32, i32
  }
  func.func @transform_2(%arg0: i32) -> (i32, i32) {
    %c0_i32 = arith.constant 0 : i32
    %c0_i32_0 = arith.constant 0 : i32
    %c0_i32_1 = arith.constant 0 : i32
    return %c0_i32, %c0_i32_0 : i32, i32
  }
  func.func @transform_3(%arg0: i32) -> (i32, i32) {
    %c0_i32 = arith.constant 0 : i32
    %c0_i32_0 = arith.constant 0 : i32
    %c0_i32_1 = arith.constant 0 : i32
    return %c0_i32, %c0_i32_0 : i32, i32
  }
  func.func @transform_4(%arg0: i32) -> (i32, i32) {
    %c0_i32 = arith.constant 0 : i32
    %c0_i32_0 = arith.constant 0 : i32
    %c0_i32_1 = arith.constant 0 : i32
    return %c0_i32, %c0_i32_0 : i32, i32
  }
  func.func @transform_5(%arg0: i32) -> (i32, i32) {
    %c0_i32 = arith.constant 0 : i32
    %c0_i32_0 = arith.constant 0 : i32
    %c0_i32_1 = arith.constant 0 : i32
    return %c0_i32, %c0_i32_0 : i32, i32
  }
  func.func @transform_6(%arg0: i32) -> (i32, i32) {
    %c0_i32 = arith.constant 0 : i32
    %c0_i32_0 = arith.constant 0 : i32
    %c0_i32_1 = arith.constant 0 : i32
    return %c0_i32, %c0_i32_0 : i32, i32
  }
  func.func @transform_7(%arg0: i32) -> (i32, i32) {
    %c0_i32 = arith.constant 0 : i32
    %c0_i32_0 = arith.constant 0 : i32
    return %arg0, %c0_i32 : i32, i32
  }
}

</mosaic_0001>

<llo_original>
// kernel: tpu_custom_call.1
$region0: #{tpu_custom_call.1}
  #allocation0 [shape = 'u32[]', space=smem, size = 0x4, offset = 0x4, fixed_abs, tag = 'smem constant byte address 0x4 - core index']
  #allocation1 [shape = 'u32[144,128]{1,0:T(1,128)}', space=vmem, size = 0x12000, scoped, tag = 'internal scratch']
  %s0 = inlined_call_operand.hbm [shape: f32[8,256], index: 0, kind: input, shape index: {}]
  %s1 = inlined_call_operand.hbm [shape: bf16[256,512], index: 1, kind: input, shape index: {}]
  %s2 = inlined_call_operand.hbm [shape: f32[1,512], index: 2, kind: input, shape index: {}]
  %s3 = inlined_call_operand.hbm [shape: bf16[512,128], index: 3, kind: input, shape index: {}]
  %s4 = inlined_call_operand.vmem [shape: f32[1,128], index: 4, kind: input, shape index: {}]
  %s5 = inlined_call_operand.hbm [shape: bf16[128,128], index: 5, kind: input, shape index: {}]
  %s6 = inlined_call_operand.vmem [shape: f32[1,128], index: 6, kind: input, shape index: {}]
  %s7 = inlined_call_operand.hbm [shape: f32[8,128], index: 7, kind: output, shape index: {}]
  %s8 = sld [smem:[#allocation0]]
  $region58: #{tpu_custom_call.1} parent=0
    _
  %s10 = ssub.s32 1, %s8
  %s11 = scalar_select 0, %s10, %s8
  $region1: #{tpu_custom_call.1} parent=0
    #allocation2 [shape = 'u8[8192]{0}', space=vmem, size = 0x2000, scoped, tag = 'input window, operand 0, single buffered']
    #allocation3 [shape = 's32[1]{0}', space=sflag, size = 0x4, scoped, tag = 'scoped memory for tpu_custom_call.1']
    #allocation4 [shape = 's32[1]{0}', space=sflag, size = 0x4, scoped, tag = 'scoped memory for tpu_custom_call.1']
    #allocation5 [shape = 'u8[262144]{0}', space=vmem, size = 0x40000, scoped, tag = 'input window, operand 1, single buffered']
    #allocation6 [shape = 's32[1]{0}', space=sflag, size = 0x4, scoped, tag = 'scoped memory for tpu_custom_call.1']
    #allocation7 [shape = 'u8[2048]{0}', space=vmem, size = 0x800, scoped, tag = 'input window, operand 2, single buffered']
    #allocation8 [shape = 'u8[131072]{0}', space=vmem, size = 0x20000, scoped, tag = 'input window, operand 3, single buffered']
    #allocation9 [shape = 's32[1]{0}', space=sflag, size = 0x4, scoped, tag = 'scoped memory for tpu_custom_call.1']
    #allocation10 [shape = 'u8[32768]{0}', space=vmem, size = 0x8000, scoped, tag = 'input window, operand 5, single buffered']
    #allocation11 [shape = 'u8[4096]{0}', space=vmem, size = 0x1000, scoped, tag = 'output window, operand 0, single buffered']
    %12 = vsyncpa [#allocation3], 0
    %13 = vsyncpa [#allocation6], 0
    %14 = vsyncpa [#allocation9], 0
    %15 = vsyncpa [#allocation4], 0
    // Predicated region
    $region2: #{tpu_custom_call.1} parent=1 // pred_check
      _
    $region3: #{tpu_custom_call.1} parent=1 // pred_check_branch
      %17 = sbr.rel (0) target = $region5
    $region4: #{tpu_custom_call.1} parent=1 // pred_region
      %s19 = ssub.s32 256, 256
      %20 = vsyncadd [#allocation3], %s19
      %s22 = sshll.u32 [#allocation2], 4
      %s23 = int_to_ptr.vmem [resolvable:$true] %s22
      %25 = dma.hbm_to_vmem [thread:$0]  %s0, 256, %s23, [#allocation3]
    $region5: #{tpu_custom_call.1} parent=1 // pred_fallthru
      _
    // Predicated region
    $region6: #{tpu_custom_call.1} parent=1 // pred_check
      _
    $region7: #{tpu_custom_call.1} parent=1 // pred_check_branch
      %27 = sbr.rel (0) target = $region9
    $region8: #{tpu_custom_call.1} parent=1 // pred_region
      %s29 = ssub.s32 8192, 8192
      %30 = vsyncadd [#allocation6], %s29
      %s31 = sshll.u32 [#allocation5], 4
      %s32 = int_to_ptr.vmem [resolvable:$true] %s31
      %37 = dma.hbm_to_vmem [thread:$0]  %s1, 8192, %s32, [#allocation6], 256, 256, 16
    $region9: #{tpu_custom_call.1} parent=1 // pred_fallthru
      _
    // Predicated region
    $region10: #{tpu_custom_call.1} parent=1 // pred_check
      _
    $region11: #{tpu_custom_call.1} parent=1 // pred_check_branch
      %39 = sbr.rel (0) target = $region13
    $region12: #{tpu_custom_call.1} parent=1 // pred_region
      %s41 = ssub.s32 64, 64
      %42 = vsyncadd [#allocation6], %s41
      %s44 = sshll.u32 [#allocation7], 4
      %s45 = int_to_ptr.vmem [resolvable:$true] %s44
      %47 = dma.hbm_to_vmem [thread:$0]  %s2, 64, %s45, [#allocation6]
    $region13: #{tpu_custom_call.1} parent=1 // pred_fallthru
      _
    // Predicated region
    $region14: #{tpu_custom_call.1} parent=1 // pred_check
      _
    $region15: #{tpu_custom_call.1} parent=1 // pred_check_branch
      %49 = sbr.rel (0) target = $region17
    $region16: #{tpu_custom_call.1} parent=1 // pred_region
      %s51 = ssub.s32 4096, 4096
      %52 = vsyncadd [#allocation9], %s51
      %s53 = sshll.u32 [#allocation8], 4
      %s54 = int_to_ptr.vmem [resolvable:$true] %s53
      %59 = dma.hbm_to_vmem [thread:$0]  %s3, 4096, %s54, [#allocation9], 64, 64, 4
    $region17: #{tpu_custom_call.1} parent=1 // pred_fallthru
      _
    // Predicated region
    $region18: #{tpu_custom_call.1} parent=1 // pred_check
      _
    $region19: #{tpu_custom_call.1} parent=1 // pred_check_branch
      %61 = sbr.rel (0) target = $region21
    $region20: #{tpu_custom_call.1} parent=1 // pred_region
      _
    $region21: #{tpu_custom_call.1} parent=1 // pred_fallthru
      _
    // Predicated region
    $region22: #{tpu_custom_call.1} parent=1 // pred_check
      _
    $region23: #{tpu_custom_call.1} parent=1 // pred_check_branch
      %63 = sbr.rel (0) target = $region25
    $region24: #{tpu_custom_call.1} parent=1 // pred_region
      %s65 = ssub.s32 1024, 1024
      %66 = vsyncadd [#allocation9], %s65
      %s67 = sshll.u32 [#allocation10], 4
      %s68 = int_to_ptr.vmem [resolvable:$true] %s67
      %73 = dma.hbm_to_vmem [thread:$0]  %s5, 1024, %s68, [#allocation9], 64, 64, 4
    $region25: #{tpu_custom_call.1} parent=1 // pred_fallthru
      _
    // Predicated region
    $region26: #{tpu_custom_call.1} parent=1 // pred_check
      _
    $region27: #{tpu_custom_call.1} parent=1 // pred_check_branch
      %75 = sbr.rel (0) target = $region29
    $region28: #{tpu_custom_call.1} parent=1 // pred_region
      _
    $region29: #{tpu_custom_call.1} parent=1 // pred_fallthru
      _
    // Predicated region
    $region30: #{tpu_custom_call.1} parent=1 // pred_check
      _
    $region31: #{tpu_custom_call.1} parent=1 // pred_check_branch
      %77 = sbr.rel (0) target = $region33
    $region32: #{tpu_custom_call.1} parent=1 // pred_region
      %78 = dma.done [#allocation3], 256
    $region33: #{tpu_custom_call.1} parent=1 // pred_fallthru
      _
    // Predicated region
    $region34: #{tpu_custom_call.1} parent=1 // pred_check
      _
    $region35: #{tpu_custom_call.1} parent=1 // pred_check_branch
      %80 = sbr.rel (0) target = $region37
    $region36: #{tpu_custom_call.1} parent=1 // pred_region
      %81 = dma.done [#allocation6], 8192
    $region37: #{tpu_custom_call.1} parent=1 // pred_fallthru
      _
    // Predicated region
    $region38: #{tpu_custom_call.1} parent=1 // pred_check
      _
    $region39: #{tpu_custom_call.1} parent=1 // pred_check_branch
      %83 = sbr.rel (0) target = $region41
    $region40: #{tpu_custom_call.1} parent=1 // pred_region
      %84 = dma.done [#allocation6], 64
    $region41: #{tpu_custom_call.1} parent=1 // pred_fallthru
      _
    // Predicated region
    $region42: #{tpu_custom_call.1} parent=1 // pred_check
      _
    $region43: #{tpu_custom_call.1} parent=1 // pred_check_branch
      %86 = sbr.rel (0) target = $region45
    $region44: #{tpu_custom_call.1} parent=1 // pred_region
      %87 = dma.done [#allocation9], 4096
    $region45: #{tpu_custom_call.1} parent=1 // pred_fallthru
      _
    // Predicated region
    $region46: #{tpu_custom_call.1} parent=1 // pred_check
      _
    $region47: #{tpu_custom_call.1} parent=1 // pred_check_branch
      %89 = sbr.rel (0) target = $region49
    $region48: #{tpu_custom_call.1} parent=1 // pred_region
      %90 = dma.done [#allocation9], 1024
    $region49: #{tpu_custom_call.1} parent=1 // pred_fallthru
      _
    %v92 = vld [vmem:[#allocation2] sm:$0xff]
    %v93 = vld [vmem:[#allocation2 + $0x8] sm:$0xff]
    %v94 = vpack.c.bf16 %v92, %v92
    %v95 = vpack.c.bf16 %v93, %v93
    %v96 = vld [vmem:[#allocation5] sm:$0xff]
    %v97 = vld [vmem:[#allocation5 + $0x8] sm:$0xff]
    %v98 = vld [vmem:[#allocation5 + $0x10] sm:$0xff]
    %v99 = vld [vmem:[#allocation5 + $0x18] sm:$0xff]
    %v100 = vld [vmem:[#allocation5 + $0x20] sm:$0xff]
    %v101 = vld [vmem:[#allocation5 + $0x28] sm:$0xff]
    %v102 = vld [vmem:[#allocation5 + $0x30] sm:$0xff]
    %v103 = vld [vmem:[#allocation5 + $0x38] sm:$0xff]
    %v104 = vld [vmem:[#allocation5 + $0x40] sm:$0xff]
    %v105 = vld [vmem:[#allocation5 + $0x48] sm:$0xff]
    %v106 = vld [vmem:[#allocation5 + $0x50] sm:$0xff]
    %v107 = vld [vmem:[#allocation5 + $0x58] sm:$0xff]
    %v108 = vld [vmem:[#allocation5 + $0x60] sm:$0xff]
    %v109 = vld [vmem:[#allocation5 + $0x68] sm:$0xff]
    %v110 = vld [vmem:[#allocation5 + $0x70] sm:$0xff]
    %v111 = vld [vmem:[#allocation5 + $0x78] sm:$0xff]
    %v112 = vld [vmem:[#allocation5 + $0x80] sm:$0xff]
    %v113 = vld [vmem:[#allocation5 + $0x88] sm:$0xff]
    %v114 = vld [vmem:[#allocation5 + $0x90] sm:$0xff]
    %v115 = vld [vmem:[#allocation5 + $0x98] sm:$0xff]
    %v116 = vld [vmem:[#allocation5 + $0xa0] sm:$0xff]
    %v117 = vld [vmem:[#allocation5 + $0xa8] sm:$0xff]
    %v118 = vld [vmem:[#allocation5 + $0xb0] sm:$0xff]
    %v119 = vld [vmem:[#allocation5 + $0xb8] sm:$0xff]
    %v120 = vld [vmem:[#allocation5 + $0xc0] sm:$0xff]
    %v121 = vld [vmem:[#allocation5 + $0xc8] sm:$0xff]
    %v122 = vld [vmem:[#allocation5 + $0xd0] sm:$0xff]
    %v123 = vld [vmem:[#allocation5 + $0xd8] sm:$0xff]
    %v124 = vld [vmem:[#allocation5 + $0xe0] sm:$0xff]
    %v125 = vld [vmem:[#allocation5 + $0xe8] sm:$0xff]
    %v126 = vld [vmem:[#allocation5 + $0xf0] sm:$0xff]
    %v127 = vld [vmem:[#allocation5 + $0xf8] sm:$0xff]
    %v128 = vld [vmem:[#allocation5 + $0x100] sm:$0xff]
    %v129 = vld [vmem:[#allocation5 + $0x108] sm:$0xff]
    %v130 = vld [vmem:[#allocation5 + $0x110] sm:$0xff]
    %v131 = vld [vmem:[#allocation5 + $0x118] sm:$0xff]
    %v132 = vld [vmem:[#allocation5 + $0x120] sm:$0xff]
    %v133 = vld [vmem:[#allocation5 + $0x128] sm:$0xff]
    %v134 = vld [vmem:[#allocation5 + $0x130] sm:$0xff]
    %v135 = vld [vmem:[#allocation5 + $0x138] sm:$0xff]
    %v136 = vld [vmem:[#allocation5 + $0x140] sm:$0xff]
    %v137 = vld [vmem:[#allocation5 + $0x148] sm:$0xff]
    %v138 = vld [vmem:[#allocation5 + $0x150] sm:$0xff]
    %v139 = vld [vmem:[#allocation5 + $0x158] sm:$0xff]
    %v140 = vld [vmem:[#allocation5 + $0x160] sm:$0xff]
    %v141 = vld [vmem:[#allocation5 + $0x168] sm:$0xff]
    %v142 = vld [vmem:[#allocation5 + $0x170] sm:$0xff]
    %v143 = vld [vmem:[#allocation5 + $0x178] sm:$0xff]
    %v144 = vld [vmem:[#allocation5 + $0x180] sm:$0xff]
    %v145 = vld [vmem:[#allocation5 + $0x188] sm:$0xff]
    %v146 = vld [vmem:[#allocation5 + $0x190] sm:$0xff]
    %v147 = vld [vmem:[#allocation5 + $0x198] sm:$0xff]
    %v148 = vld [vmem:[#allocation5 + $0x1a0] sm:$0xff]
    %v149 = vld [vmem:[#allocation5 + $0x1a8] sm:$0xff]
    %v150 = vld [vmem:[#allocation5 + $0x1b0] sm:$0xff]
    %v151 = vld [vmem:[#allocation5 + $0x1b8] sm:$0xff]
    %v152 = vld [vmem:[#allocation5 + $0x1c0] sm:$0xff]
    %v153 = vld [vmem:[#allocation5 + $0x1c8] sm:$0xff]
    %v154 = vld [vmem:[#allocation5 + $0x1d0] sm:$0xff]
    %v155 = vld [vmem:[#allocation5 + $0x1d8] sm:$0xff]
    %v156 = vld [vmem:[#allocation5 + $0x1e0] sm:$0xff]
    %v157 = vld [vmem:[#allocation5 + $0x1e8] sm:$0xff]
    %v158 = vld [vmem:[#allocation5 + $0x1f0] sm:$0xff]
    %v159 = vld [vmem:[#allocation5 + $0x1f8] sm:$0xff]
    %v160 = vld [vmem:[#allocation7] sm:$0xf]
    %v162 = vlaneseq
    %v163 = vshrl.u32 %v162, 7
    %v164 = vsub.s32 0, %v163
    %v165 = vrot.slane %v160, %v164
    %v166 = vlaneseq
    %v167 = vshrl.u32 %v166, 7
    %v168 = vsub.s32 1, %v167
    %v169 = vrot.slane %v160, %v168
    %v170 = vlaneseq
    %v171 = vshrl.u32 %v170, 7
    %v172 = vsub.s32 2, %v171
    %v173 = vrot.slane %v160, %v172
    %v174 = vlaneseq
    %v175 = vshrl.u32 %v174, 7
    %v176 = vsub.s32 3, %v175
    %v177 = vrot.slane %v160, %v176
    %v246 = vunpack.c.l.b16 %v96
    %v247 = vunpack.c.h.b16 %v96
    %v248 = vunpack.c.l.b16 %v97
    %v249 = vunpack.c.h.b16 %v97
    %v250 = vunpack.c.l.b16 %v98
    %v251 = vunpack.c.h.b16 %v98
    %v252 = vunpack.c.l.b16 %v99
    %v253 = vunpack.c.h.b16 %v99
    %v254 = vunpack.c.l.b16 %v100
    %v255 = vunpack.c.h.b16 %v100
    %v256 = vunpack.c.l.b16 %v101
    %v257 = vunpack.c.h.b16 %v101
    %v258 = vunpack.c.l.b16 %v102
    %v259 = vunpack.c.h.b16 %v102
    %v260 = vunpack.c.l.b16 %v103
    %v261 = vunpack.c.h.b16 %v103
    %v262 = vunpack.c.l.b16 %v104
    %v263 = vunpack.c.h.b16 %v104
    %v264 = vunpack.c.l.b16 %v105
    %v265 = vunpack.c.h.b16 %v105
    %v266 = vunpack.c.l.b16 %v106
    %v267 = vunpack.c.h.b16 %v106
    %v268 = vunpack.c.l.b16 %v107
    %v269 = vunpack.c.h.b16 %v107
    %v270 = vunpack.c.l.b16 %v108
    %v271 = vunpack.c.h.b16 %v108
    %v272 = vunpack.c.l.b16 %v109
    %v273 = vunpack.c.h.b16 %v109
    %v274 = vunpack.c.l.b16 %v110
    %v275 = vunpack.c.h.b16 %v110
    %v276 = vunpack.c.l.b16 %v111
    %v277 = vunpack.c.h.b16 %v111
    %v278 = vunpack.c.l.b16 %v112
    %v279 = vunpack.c.h.b16 %v112
    %v280 = vunpack.c.l.b16 %v113
    %v281 = vunpack.c.h.b16 %v113
    %v282 = vunpack.c.l.b16 %v114
    %v283 = vunpack.c.h.b16 %v114
    %v284 = vunpack.c.l.b16 %v115
    %v285 = vunpack.c.h.b16 %v115
    %v286 = vunpack.c.l.b16 %v116
    %v287 = vunpack.c.h.b16 %v116
    %v288 = vunpack.c.l.b16 %v117
    %v289 = vunpack.c.h.b16 %v117
    %v290 = vunpack.c.l.b16 %v118
    %v291 = vunpack.c.h.b16 %v118
    %v292 = vunpack.c.l.b16 %v119
    %v293 = vunpack.c.h.b16 %v119
    %v294 = vunpack.c.l.b16 %v120
    %v295 = vunpack.c.h.b16 %v120
    %v296 = vunpack.c.l.b16 %v121
    %v297 = vunpack.c.h.b16 %v121
    %v298 = vunpack.c.l.b16 %v122
    %v299 = vunpack.c.h.b16 %v122
    %v300 = vunpack.c.l.b16 %v123
    %v301 = vunpack.c.h.b16 %v123
    %v302 = vunpack.c.l.b16 %v124
    %v303 = vunpack.c.h.b16 %v124
    %v304 = vunpack.c.l.b16 %v125
    %v305 = vunpack.c.h.b16 %v125
    %v306 = vunpack.c.l.b16 %v126
    %v307 = vunpack.c.h.b16 %v126
    %v308 = vunpack.c.l.b16 %v127
    %v309 = vunpack.c.h.b16 %v127
    %v310 = vunpack.c.l.b16 %v128
    %v311 = vunpack.c.h.b16 %v128
    %v312 = vunpack.c.l.b16 %v129
    %v313 = vunpack.c.h.b16 %v129
    %v314 = vunpack.c.l.b16 %v130
    %v315 = vunpack.c.h.b16 %v130
    %v316 = vunpack.c.l.b16 %v131
    %v317 = vunpack.c.h.b16 %v131
    %v318 = vunpack.c.l.b16 %v132
    %v319 = vunpack.c.h.b16 %v132
    %v320 = vunpack.c.l.b16 %v133
    %v321 = vunpack.c.h.b16 %v133
    %v322 = vunpack.c.l.b16 %v134
    %v323 = vunpack.c.h.b16 %v134
    %v324 = vunpack.c.l.b16 %v135
    %v325 = vunpack.c.h.b16 %v135
    %v326 = vunpack.c.l.b16 %v136
    %v327 = vunpack.c.h.b16 %v136
    %v328 = vunpack.c.l.b16 %v137
    %v329 = vunpack.c.h.b16 %v137
    %v330 = vunpack.c.l.b16 %v138
    %v331 = vunpack.c.h.b16 %v138
    %v332 = vunpack.c.l.b16 %v139
    %v333 = vunpack.c.h.b16 %v139
    %v334 = vunpack.c.l.b16 %v140
    %v335 = vunpack.c.h.b16 %v140
    %v336 = vunpack.c.l.b16 %v141
    %v337 = vunpack.c.h.b16 %v141
    %v338 = vunpack.c.l.b16 %v142
    %v339 = vunpack.c.h.b16 %v142
    %v340 = vunpack.c.l.b16 %v143
    %v341 = vunpack.c.h.b16 %v143
    %v342 = vunpack.c.l.b16 %v144
    %v343 = vunpack.c.h.b16 %v144
    %v344 = vunpack.c.l.b16 %v145
    %v345 = vunpack.c.h.b16 %v145
    %v346 = vunpack.c.l.b16 %v146
    %v347 = vunpack.c.h.b16 %v146
    %v348 = vunpack.c.l.b16 %v147
    %v349 = vunpack.c.h.b16 %v147
    %v350 = vunpack.c.l.b16 %v148
    %v351 = vunpack.c.h.b16 %v148
    %v352 = vunpack.c.l.b16 %v149
    %v353 = vunpack.c.h.b16 %v149
    %v354 = vunpack.c.l.b16 %v150
    %v355 = vunpack.c.h.b16 %v150
    %v356 = vunpack.c.l.b16 %v151
    %v357 = vunpack.c.h.b16 %v151
    %v358 = vunpack.c.l.b16 %v152
    %v359 = vunpack.c.h.b16 %v152
    %v360 = vunpack.c.l.b16 %v153
    %v361 = vunpack.c.h.b16 %v153
    %v362 = vunpack.c.l.b16 %v154
    %v363 = vunpack.c.h.b16 %v154
    %v364 = vunpack.c.l.b16 %v155
    %v365 = vunpack.c.h.b16 %v155
    %v366 = vunpack.c.l.b16 %v156
    %v367 = vunpack.c.h.b16 %v156
    %v368 = vunpack.c.l.b16 %v157
    %v369 = vunpack.c.h.b16 %v157
    %v370 = vunpack.c.l.b16 %v158
    %v371 = vunpack.c.h.b16 %v158
    %v372 = vunpack.c.l.b16 %v159
    %v373 = vunpack.c.h.b16 %v159
    %v374 = vpack.c.b16 %v250, %v246
    %v375 = vpack.c.b16 %v251, %v247
    %v376 = vpack.c.b16 %v252, %v248
    %v377 = vpack.c.b16 %v253, %v249
    %v378 = vpack.c.b16 %v258, %v254
    %v379 = vpack.c.b16 %v259, %v255
    %v380 = vpack.c.b16 %v260, %v256
    %v381 = vpack.c.b16 %v261, %v257
    %v382 = vpack.c.b16 %v266, %v262
    %v383 = vpack.c.b16 %v267, %v263
    %v384 = vpack.c.b16 %v268, %v264
    %v385 = vpack.c.b16 %v269, %v265
    %v386 = vpack.c.b16 %v274, %v270
    %v387 = vpack.c.b16 %v275, %v271
    %v388 = vpack.c.b16 %v276, %v272
    %v389 = vpack.c.b16 %v277, %v273
    %v390 = vpack.c.b16 %v282, %v278
    %v391 = vpack.c.b16 %v283, %v279
    %v392 = vpack.c.b16 %v284, %v280
    %v393 = vpack.c.b16 %v285, %v281
    %v394 = vpack.c.b16 %v290, %v286
    %v395 = vpack.c.b16 %v291, %v287
    %v396 = vpack.c.b16 %v292, %v288
    %v397 = vpack.c.b16 %v293, %v289
    %v398 = vpack.c.b16 %v298, %v294
    %v399 = vpack.c.b16 %v299, %v295
    %v400 = vpack.c.b16 %v300, %v296
    %v401 = vpack.c.b16 %v301, %v297
    %v402 = vpack.c.b16 %v306, %v302
    %v403 = vpack.c.b16 %v307, %v303
    %v404 = vpack.c.b16 %v308, %v304
    %v405 = vpack.c.b16 %v309, %v305
    %v406 = vpack.c.b16 %v314, %v310
    %v407 = vpack.c.b16 %v315, %v311
    %v408 = vpack.c.b16 %v316, %v312
    %v409 = vpack.c.b16 %v317, %v313
    %v410 = vpack.c.b16 %v322, %v318
    %v411 = vpack.c.b16 %v323, %v319
    %v412 = vpack.c.b16 %v324, %v320
    %v413 = vpack.c.b16 %v325, %v321
    %v414 = vpack.c.b16 %v330, %v326
    %v415 = vpack.c.b16 %v331, %v327
    %v416 = vpack.c.b16 %v332, %v328
    %v417 = vpack.c.b16 %v333, %v329
    %v418 = vpack.c.b16 %v338, %v334
    %v419 = vpack.c.b16 %v339, %v335
    %v420 = vpack.c.b16 %v340, %v336
    %v421 = vpack.c.b16 %v341, %v337
    %v422 = vpack.c.b16 %v346, %v342
    %v423 = vpack.c.b16 %v347, %v343
    %v424 = vpack.c.b16 %v348, %v344
    %v425 = vpack.c.b16 %v349, %v345
    %v426 = vpack.c.b16 %v354, %v350
    %v427 = vpack.c.b16 %v355, %v351
    %v428 = vpack.c.b16 %v356, %v352
    %v429 = vpack.c.b16 %v357, %v353
    %v430 = vpack.c.b16 %v362, %v358
    %v431 = vpack.c.b16 %v363, %v359
    %v432 = vpack.c.b16 %v364, %v360
    %v433 = vpack.c.b16 %v365, %v361
    %v434 = vpack.c.b16 %v370, %v366
    %v435 = vpack.c.b16 %v371, %v367
    %v436 = vpack.c.b16 %v372, %v368
    %v437 = vpack.c.b16 %v373, %v369
    %502 = vmatprep.subr.bf16.mxu0 %v403
    %503 = vmatpush1.bf16.msra.mxu0 %v402
    %504 = vmatprep.subr.bf16.mxu0 %v399
    %505 = vmatpush1.bf16.msra.mxu0 %v398
    %506 = vmatprep.subr.bf16.mxu0 %v395
    %507 = vmatpush1.bf16.msra.mxu0 %v394
    %508 = vmatprep.subr.bf16.mxu0 %v391
    %509 = vmatpush1.bf16.msra.mxu0 %v390
    %510 = vmatprep.subr.bf16.mxu0 %v387
    %511 = vmatpush1.bf16.msra.mxu0 %v386
    %512 = vmatprep.subr.bf16.mxu0 %v383
    %513 = vmatpush1.bf16.msra.mxu0 %v382
    %514 = vmatprep.subr.bf16.mxu0 %v379
    %515 = vmatpush1.bf16.msra.mxu0 %v378
    %516 = vmatprep.subr.bf16.mxu0 %v375
    %517 = vmatpush1.bf16.msra.mxu0 %v374
    %518 = vmatprep.subr.bf16.mxu0 %v435
    %519 = vmatpush2.bf16.msra.mxu0 %v434
    %520 = vmatprep.subr.bf16.mxu0 %v431
    %521 = vmatpush2.bf16.msra.mxu0 %v430
    %522 = vmatprep.subr.bf16.mxu0 %v427
    %523 = vmatpush2.bf16.msra.mxu0 %v426
    %524 = vmatprep.subr.bf16.mxu0 %v423
    %525 = vmatpush2.bf16.msra.mxu0 %v422
    %526 = vmatprep.subr.bf16.mxu0 %v419
    %527 = vmatpush2.bf16.msra.mxu0 %v418
    %528 = vmatprep.subr.bf16.mxu0 %v415
    %529 = vmatpush2.bf16.msra.mxu0 %v414
    %530 = vmatprep.subr.bf16.mxu0 %v411
    %531 = vmatpush2.bf16.msra.mxu0 %v410
    %532 = vmatprep.subr.bf16.mxu0 %v407
    %533 = vmatpush2.bf16.msra.mxu0 %v406
    %534 = vmatprep.mubr.bf16.mxu0 %v95
    %535 = vmatmul.mubr.bf16.gmra.mxu0 %v94
    %v536 = vpop.f32.mrf.mxu0
    %v537 = vadd.f32 %v165, %v536
    %v538 = vpop.f32.mrf.mxu0
    %v539 = vadd.f32 %v169, %v538
    %v540 = vpop.f32.mrf.mxu0
    %v541 = vpop.f32.mrf.mxu0
    %542 = vdwg.mxu0
    %543 = vmatprep.subr.bf16.mxu0 %v405
    %544 = vmatpush1.bf16.msra.mxu0 %v404
    %545 = vmatprep.subr.bf16.mxu0 %v401
    %546 = vmatpush1.bf16.msra.mxu0 %v400
    %547 = vmatprep.subr.bf16.mxu0 %v397
    %548 = vmatpush1.bf16.msra.mxu0 %v396
    %549 = vmatprep.subr.bf16.mxu0 %v393
    %550 = vmatpush1.bf16.msra.mxu0 %v392
    %551 = vmatprep.subr.bf16.mxu0 %v389
    %552 = vmatpush1.bf16.msra.mxu0 %v388
    %553 = vmatprep.subr.bf16.mxu0 %v385
    %554 = vmatpush1.bf16.msra.mxu0 %v384
    %555 = vmatprep.subr.bf16.mxu0 %v381
    %556 = vmatpush1.bf16.msra.mxu0 %v380
    %557 = vmatprep.subr.bf16.mxu0 %v377
    %558 = vmatpush1.bf16.msra.mxu0 %v376
    %559 = vmatprep.subr.bf16.mxu0 %v437
    %560 = vmatpush2.bf16.msra.mxu0 %v436
    %561 = vmatprep.subr.bf16.mxu0 %v433
    %562 = vmatpush2.bf16.msra.mxu0 %v432
    %563 = vmatprep.subr.bf16.mxu0 %v429
    %564 = vmatpush2.bf16.msra.mxu0 %v428
    %565 = vmatprep.subr.bf16.mxu0 %v425
    %566 = vmatpush2.bf16.msra.mxu0 %v424
    %567 = vmatprep.subr.bf16.mxu0 %v421
    %568 = vmatpush2.bf16.msra.mxu0 %v420
    %569 = vmatprep.subr.bf16.mxu0 %v417
    %570 = vmatpush2.bf16.msra.mxu0 %v416
    %571 = vmatprep.subr.bf16.mxu0 %v413
    %572 = vmatpush2.bf16.msra.mxu0 %v412
    %573 = vmatprep.subr.bf16.mxu0 %v409
    %574 = vmatpush2.bf16.msra.mxu0 %v408
    %575 = vmatprep.mubr.bf16.mxu0 %v95
    %576 = vmatmul.mubr.bf16.gmra.mxu0 %v94
    %v577 = vpop.f32.mrf.mxu0
    %v578 = vadd.f32 %v173, %v577
    %v579 = vpop.f32.mrf.mxu0
    %v580 = vadd.f32 %v177, %v579
    %v581 = vpop.f32.mrf.mxu0
    %v582 = vpop.f32.mrf.mxu0
    %583 = vdwg.mxu0
    %v584 = vmax.f32 %v537, 0.0
    %v585 = vmax.f32 %v539, 0.0
    %v586 = vmax.f32 %v578, 0.0
    %v587 = vmax.f32 %v580, 0.0
    %v588 = vpack.c.bf16 %v584, %v584
    %v589 = vpack.c.bf16 %v585, %v585
    %v590 = vpack.c.bf16 %v586, %v586
    %v591 = vpack.c.bf16 %v587, %v587
    %v592 = vld [vmem:[#allocation8] sm:$0xf]
    %v593 = vld [vmem:[#allocation8 + $0x4] sm:$0xf]
    %v594 = vld [vmem:[#allocation8 + $0x8] sm:$0xf]
    %v595 = vld [vmem:[#allocation8 + $0xc] sm:$0xf]
    %v596 = vld [vmem:[#allocation8 + $0x10] sm:$0xf]
    %v597 = vld [vmem:[#allocation8 + $0x14] sm:$0xf]
    %v598 = vld [vmem:[#allocation8 + $0x18] sm:$0xf]
    %v599 = vld [vmem:[#allocation8 + $0x1c] sm:$0xf]
    %v600 = vld [vmem:[#allocation8 + $0x20] sm:$0xf]
    %v601 = vld [vmem:[#allocation8 + $0x24] sm:$0xf]
    %v602 = vld [vmem:[#allocation8 + $0x28] sm:$0xf]
    %v603 = vld [vmem:[#allocation8 + $0x2c] sm:$0xf]
    %v604 = vld [vmem:[#allocation8 + $0x30] sm:$0xf]
    %v605 = vld [vmem:[#allocation8 + $0x34] sm:$0xf]
    %v606 = vld [vmem:[#allocation8 + $0x38] sm:$0xf]
    %v607 = vld [vmem:[#allocation8 + $0x3c] sm:$0xf]
    %v608 = vld [vmem:[#allocation8 + $0x40] sm:$0xf]
    %v609 = vld [vmem:[#allocation8 + $0x44] sm:$0xf]
    %v610 = vld [vmem:[#allocation8 + $0x48] sm:$0xf]
    %v611 = vld [vmem:[#allocation8 + $0x4c] sm:$0xf]
    %v612 = vld [vmem:[#allocation8 + $0x50] sm:$0xf]
    %v613 = vld [vmem:[#allocation8 + $0x54] sm:$0xf]
    %v614 = vld [vmem:[#allocation8 + $0x58] sm:$0xf]
    %v615 = vld [vmem:[#allocation8 + $0x5c] sm:$0xf]
    %v616 = vld [vmem:[#allocation8 + $0x60] sm:$0xf]
    %v617 = vld [vmem:[#allocation8 + $0x64] sm:$0xf]
    %v618 = vld [vmem:[#allocation8 + $0x68] sm:$0xf]
    %v619 = vld [vmem:[#allocation8 + $0x6c] sm:$0xf]
    %v620 = vld [vmem:[#allocation8 + $0x70] sm:$0xf]
    %v621 = vld [vmem:[#allocation8 + $0x74] sm:$0xf]
    %v622 = vld [vmem:[#allocation8 + $0x78] sm:$0xf]
    %v623 = vld [vmem:[#allocation8 + $0x7c] sm:$0xf]
    %v624 = vld [vmem:[#allocation8 + $0x80] sm:$0xf]
    %v625 = vld [vmem:[#allocation8 + $0x84] sm:$0xf]
    %v626 = vld [vmem:[#allocation8 + $0x88] sm:$0xf]
    %v627 = vld [vmem:[#allocation8 + $0x8c] sm:$0xf]
    %v628 = vld [vmem:[#allocation8 + $0x90] sm:$0xf]
    %v629 = vld [vmem:[#allocation8 + $0x94] sm:$0xf]
    %v630 = vld [vmem:[#allocation8 + $0x98] sm:$0xf]
    %v631 = vld [vmem:[#allocation8 + $0x9c] sm:$0xf]
    %v632 = vld [vmem:[#allocation8 + $0xa0] sm:$0xf]
    %v633 = vld [vmem:[#allocation8 + $0xa4] sm:$0xf]
    %v634 = vld [vmem:[#allocation8 + $0xa8] sm:$0xf]
    %v635 = vld [vmem:[#allocation8 + $0xac] sm:$0xf]
    %v636 = vld [vmem:[#allocation8 + $0xb0] sm:$0xf]
    %v637 = vld [vmem:[#allocation8 + $0xb4] sm:$0xf]
    %v638 = vld [vmem:[#allocation8 + $0xb8] sm:$0xf]
    %v639 = vld [vmem:[#allocation8 + $0xbc] sm:$0xf]
    %v640 = vld [vmem:[#allocation8 + $0xc0] sm:$0xf]
    %v641 = vld [vmem:[#allocation8 + $0xc4] sm:$0xf]
    %v642 = vld [vmem:[#allocation8 + $0xc8] sm:$0xf]
    %v643 = vld [vmem:[#allocation8 + $0xcc] sm:$0xf]
    %v644 = vld [vmem:[#allocation8 + $0xd0] sm:$0xf]
    %v645 = vld [vmem:[#allocation8 + $0xd4] sm:$0xf]
    %v646 = vld [vmem:[#allocation8 + $0xd8] sm:$0xf]
    %v647 = vld [vmem:[#allocation8 + $0xdc] sm:$0xf]
    %v648 = vld [vmem:[#allocation8 + $0xe0] sm:$0xf]
    %v649 = vld [vmem:[#allocation8 + $0xe4] sm:$0xf]
    %v650 = vld [vmem:[#allocation8 + $0xe8] sm:$0xf]
    %v651 = vld [vmem:[#allocation8 + $0xec] sm:$0xf]
    %v652 = vld [vmem:[#allocation8 + $0xf0] sm:$0xf]
    %v653 = vld [vmem:[#allocation8 + $0xf4] sm:$0xf]
    %v654 = vld [vmem:[#allocation8 + $0xf8] sm:$0xf]
    %v655 = vld [vmem:[#allocation8 + $0xfc] sm:$0xf]
    %v656 = vld [vmem:[%s4] sm:$0x1]
    %v658 = vlaneseq
    %v659 = vshrl.u32 %v658, 7
    %v660 = vsub.s32 0, %v659
    %v661 = vrot.slane %v656, %v660
    %v727 = vunpack.c.l.b16 %v592
    %v728 = vunpack.c.l.b16 %v593
    %v729 = vunpack.c.l.b16 %v594
    %v730 = vunpack.c.l.b16 %v595
    %v731 = vunpack.c.l.b16 %v596
    %v732 = vunpack.c.l.b16 %v597
    %v733 = vunpack.c.l.b16 %v598
    %v734 = vunpack.c.l.b16 %v599
    %v735 = vunpack.c.l.b16 %v600
    %v736 = vunpack.c.l.b16 %v601
    %v737 = vunpack.c.l.b16 %v602
    %v738 = vunpack.c.l.b16 %v603
    %v739 = vunpack.c.l.b16 %v604
    %v740 = vunpack.c.l.b16 %v605
    %v741 = vunpack.c.l.b16 %v606
    %v742 = vunpack.c.l.b16 %v607
    %v743 = vunpack.c.l.b16 %v608
    %v744 = vunpack.c.l.b16 %v609
    %v745 = vunpack.c.l.b16 %v610
    %v746 = vunpack.c.l.b16 %v611
    %v747 = vunpack.c.l.b16 %v612
    %v748 = vunpack.c.l.b16 %v613
    %v749 = vunpack.c.l.b16 %v614
    %v750 = vunpack.c.l.b16 %v615
    %v751 = vunpack.c.l.b16 %v616
    %v752 = vunpack.c.l.b16 %v617
    %v753 = vunpack.c.l.b16 %v618
    %v754 = vunpack.c.l.b16 %v619
    %v755 = vunpack.c.l.b16 %v620
    %v756 = vunpack.c.l.b16 %v621
    %v757 = vunpack.c.l.b16 %v622
    %v758 = vunpack.c.l.b16 %v623
    %v759 = vunpack.c.l.b16 %v624
    %v760 = vunpack.c.l.b16 %v625
    %v761 = vunpack.c.l.b16 %v626
    %v762 = vunpack.c.l.b16 %v627
    %v763 = vunpack.c.l.b16 %v628
    %v764 = vunpack.c.l.b16 %v629
    %v765 = vunpack.c.l.b16 %v630
    %v766 = vunpack.c.l.b16 %v631
    %v767 = vunpack.c.l.b16 %v632
    %v768 = vunpack.c.l.b16 %v633
    %v769 = vunpack.c.l.b16 %v634
    %v770 = vunpack.c.l.b16 %v635
    %v771 = vunpack.c.l.b16 %v636
    %v772 = vunpack.c.l.b16 %v637
    %v773 = vunpack.c.l.b16 %v638
    %v774 = vunpack.c.l.b16 %v639
    %v775 = vunpack.c.l.b16 %v640
    %v776 = vunpack.c.l.b16 %v641
    %v777 = vunpack.c.l.b16 %v642
    %v778 = vunpack.c.l.b16 %v643
    %v779 = vunpack.c.l.b16 %v644
    %v780 = vunpack.c.l.b16 %v645
    %v781 = vunpack.c.l.b16 %v646
    %v782 = vunpack.c.l.b16 %v647
    %v783 = vunpack.c.l.b16 %v648
    %v784 = vunpack.c.l.b16 %v649
    %v785 = vunpack.c.l.b16 %v650
    %v786 = vunpack.c.l.b16 %v651
    %v787 = vunpack.c.l.b16 %v652
    %v788 = vunpack.c.l.b16 %v653
    %v789 = vunpack.c.l.b16 %v654
    %v790 = vunpack.c.l.b16 %v655
    %v791 = vpack.c.b16 %v728, %v727
    %v792 = vpack.c.b16 %v730, %v729
    %v793 = vpack.c.b16 %v732, %v731
    %v794 = vpack.c.b16 %v734, %v733
    %v795 = vpack.c.b16 %v736, %v735
    %v796 = vpack.c.b16 %v738, %v737
    %v797 = vpack.c.b16 %v740, %v739
    %v798 = vpack.c.b16 %v742, %v741
    %v799 = vpack.c.b16 %v744, %v743
    %v800 = vpack.c.b16 %v746, %v745
    %v801 = vpack.c.b16 %v748, %v747
    %v802 = vpack.c.b16 %v750, %v749
    %v803 = vpack.c.b16 %v752, %v751
    %v804 = vpack.c.b16 %v754, %v753
    %v805 = vpack.c.b16 %v756, %v755
    %v806 = vpack.c.b16 %v758, %v757
    %v807 = vpack.c.b16 %v760, %v759
    %v808 = vpack.c.b16 %v762, %v761
    %v809 = vpack.c.b16 %v764, %v763
    %v810 = vpack.c.b16 %v766, %v765
    %v811 = vpack.c.b16 %v768, %v767
    %v812 = vpack.c.b16 %v770, %v769
    %v813 = vpack.c.b16 %v772, %v771
    %v814 = vpack.c.b16 %v774, %v773
    %v815 = vpack.c.b16 %v776, %v775
    %v816 = vpack.c.b16 %v778, %v777
    %v817 = vpack.c.b16 %v780, %v779
    %v818 = vpack.c.b16 %v782, %v781
    %v819 = vpack.c.b16 %v784, %v783
    %v820 = vpack.c.b16 %v786, %v785
    %v821 = vpack.c.b16 %v788, %v787
    %v822 = vpack.c.b16 %v790, %v789
    %855 = vmatprep.subr.bf16.mxu0 0
    %856 = vmatpush1.bf16.msra.mxu0 %v798
    %857 = vmatprep.subr.bf16.mxu0 0
    %858 = vmatpush1.bf16.msra.mxu0 %v797
    %859 = vmatprep.subr.bf16.mxu0 0
    %860 = vmatpush1.bf16.msra.mxu0 %v796
    %861 = vmatprep.subr.bf16.mxu0 0
    %862 = vmatpush1.bf16.msra.mxu0 %v795
    %863 = vmatprep.subr.bf16.mxu0 0
    %864 = vmatpush1.bf16.msra.mxu0 %v794
    %865 = vmatprep.subr.bf16.mxu0 0
    %866 = vmatpush1.bf16.msra.mxu0 %v793
    %867 = vmatprep.subr.bf16.mxu0 0
    %868 = vmatpush1.bf16.msra.mxu0 %v792
    %869 = vmatprep.subr.bf16.mxu0 0
    %870 = vmatpush1.bf16.msra.mxu0 %v791
    %871 = vmatprep.subr.bf16.mxu0 0
    %872 = vmatpush2.bf16.msra.mxu0 %v806
    %873 = vmatprep.subr.bf16.mxu0 0
    %874 = vmatpush2.bf16.msra.mxu0 %v805
    %875 = vmatprep.subr.bf16.mxu0 0
    %876 = vmatpush2.bf16.msra.mxu0 %v804
    %877 = vmatprep.subr.bf16.mxu0 0
    %878 = vmatpush2.bf16.msra.mxu0 %v803
    %879 = vmatprep.subr.bf16.mxu0 0
    %880 = vmatpush2.bf16.msra.mxu0 %v802
    %881 = vmatprep.subr.bf16.mxu0 0
    %882 = vmatpush2.bf16.msra.mxu0 %v801
    %883 = vmatprep.subr.bf16.mxu0 0
    %884 = vmatpush2.bf16.msra.mxu0 %v800
    %885 = vmatprep.subr.bf16.mxu0 0
    %886 = vmatpush2.bf16.msra.mxu0 %v799
    %887 = vmatprep.mubr.bf16.mxu0 %v589
    %888 = vmatmul.mubr.bf16.gmra.mxu0 %v588
    %v889 = vpop.f32.mrf.mxu0
    %v890 = vadd.f32 %v661, %v889
    %v891 = vpop.f32.mrf.mxu0
    %v892 = vpop.f32.mrf.mxu0
    %v893 = vpop.f32.mrf.mxu0
    %894 = vdwg.mxu0
    %895 = vmatprep.subr.bf16.mxu0 0
    %896 = vmatpush1.bf16.msra.mxu0 %v814
    %897 = vmatprep.subr.bf16.mxu0 0
    %898 = vmatpush1.bf16.msra.mxu0 %v813
    %899 = vmatprep.subr.bf16.mxu0 0
    %900 = vmatpush1.bf16.msra.mxu0 %v812
    %901 = vmatprep.subr.bf16.mxu0 0
    %902 = vmatpush1.bf16.msra.mxu0 %v811
    %903 = vmatprep.subr.bf16.mxu0 0
    %904 = vmatpush1.bf16.msra.mxu0 %v810
    %905 = vmatprep.subr.bf16.mxu0 0
    %906 = vmatpush1.bf16.msra.mxu0 %v809
    %907 = vmatprep.subr.bf16.mxu0 0
    %908 = vmatpush1.bf16.msra.mxu0 %v808
    %909 = vmatprep.subr.bf16.mxu0 0
    %910 = vmatpush1.bf16.msra.mxu0 %v807
    %911 = vmatprep.subr.bf16.mxu0 0
    %912 = vmatpush2.bf16.msra.mxu0 %v822
    %913 = vmatprep.subr.bf16.mxu0 0
    %914 = vmatpush2.bf16.msra.mxu0 %v821
    %915 = vmatprep.subr.bf16.mxu0 0
    %916 = vmatpush2.bf16.msra.mxu0 %v820
    %917 = vmatprep.subr.bf16.mxu0 0
    %918 = vmatpush2.bf16.msra.mxu0 %v819
    %919 = vmatprep.subr.bf16.mxu0 0
    %920 = vmatpush2.bf16.msra.mxu0 %v818
    %921 = vmatprep.subr.bf16.mxu0 0
    %922 = vmatpush2.bf16.msra.mxu0 %v817
    %923 = vmatprep.subr.bf16.mxu0 0
    %924 = vmatpush2.bf16.msra.mxu0 %v816
    %925 = vmatprep.subr.bf16.mxu0 0
    %926 = vmatpush2.bf16.msra.mxu0 %v815
    %927 = vmatprep.mubr.bf16.mxu0 %v591
    %928 = vmatmul.mubr.bf16.gmra.mxu0 %v590
    %v929 = vpop.f32.mrf.mxu0
    %v930 = vadd.f32 %v890, %v929
    %v931 = vpop.f32.mrf.mxu0
    %v932 = vpop.f32.mrf.mxu0
    %v933 = vpop.f32.mrf.mxu0
    %934 = vdwg.mxu0
    %v935 = vmax.f32 %v930, 0.0
    %v936 = vpack.c.bf16 %v935, %v935
    %v937 = vld [vmem:[#allocation10] sm:$0xf]
    %v938 = vld [vmem:[#allocation10 + $0x4] sm:$0xf]
    %v939 = vld [vmem:[#allocation10 + $0x8] sm:$0xf]
    %v940 = vld [vmem:[#allocation10 + $0xc] sm:$0xf]
    %v941 = vld [vmem:[#allocation10 + $0x10] sm:$0xf]
    %v942 = vld [vmem:[#allocation10 + $0x14] sm:$0xf]
    %v943 = vld [vmem:[#allocation10 + $0x18] sm:$0xf]
    %v944 = vld [vmem:[#allocation10 + $0x1c] sm:$0xf]
    %v945 = vld [vmem:[#allocation10 + $0x20] sm:$0xf]
    %v946 = vld [vmem:[#allocation10 + $0x24] sm:$0xf]
    %v947 = vld [vmem:[#allocation10 + $0x28] sm:$0xf]
    %v948 = vld [vmem:[#allocation10 + $0x2c] sm:$0xf]
    %v949 = vld [vmem:[#allocation10 + $0x30] sm:$0xf]
    %v950 = vld [vmem:[#allocation10 + $0x34] sm:$0xf]
    %v951 = vld [vmem:[#allocation10 + $0x38] sm:$0xf]
    %v952 = vld [vmem:[#allocation10 + $0x3c] sm:$0xf]
    %v953 = vld [vmem:[%s6] sm:$0x1]
    %v955 = vlaneseq
    %v956 = vshrl.u32 %v955, 7
    %v957 = vsub.s32 0, %v956
    %v958 = vrot.slane %v953, %v957
    %v976 = vunpack.c.l.b16 %v937
    %v977 = vunpack.c.l.b16 %v938
    %v978 = vunpack.c.l.b16 %v939
    %v979 = vunpack.c.l.b16 %v940
    %v980 = vunpack.c.l.b16 %v941
    %v981 = vunpack.c.l.b16 %v942
    %v982 = vunpack.c.l.b16 %v943
    %v983 = vunpack.c.l.b16 %v944
    %v984 = vunpack.c.l.b16 %v945
    %v985 = vunpack.c.l.b16 %v946
    %v986 = vunpack.c.l.b16 %v947
    %v987 = vunpack.c.l.b16 %v948
    %v988 = vunpack.c.l.b16 %v949
    %v989 = vunpack.c.l.b16 %v950
    %v990 = vunpack.c.l.b16 %v951
    %v991 = vunpack.c.l.b16 %v952
    %v992 = vpack.c.b16 %v977, %v976
    %v993 = vpack.c.b16 %v979, %v978
    %v994 = vpack.c.b16 %v981, %v980
    %v995 = vpack.c.b16 %v983, %v982
    %v996 = vpack.c.b16 %v985, %v984
    %v997 = vpack.c.b16 %v987, %v986
    %v998 = vpack.c.b16 %v989, %v988
    %v999 = vpack.c.b16 %v991, %v990
    %1008 = vmatprep.subr.bf16.mxu0 0
    %1009 = vmatpush1.bf16.msra.mxu0 %v999
    %1010 = vmatprep.subr.bf16.mxu0 0
    %1011 = vmatpush1.bf16.msra.mxu0 %v998
    %1012 = vmatprep.subr.bf16.mxu0 0
    %1013 = vmatpush1.bf16.msra.mxu0 %v997
    %1014 = vmatprep.subr.bf16.mxu0 0
    %1015 = vmatpush1.bf16.msra.mxu0 %v996
    %1016 = vmatprep.subr.bf16.mxu0 0
    %1017 = vmatpush1.bf16.msra.mxu0 %v995
    %1018 = vmatprep.subr.bf16.mxu0 0
    %1019 = vmatpush1.bf16.msra.mxu0 %v994
    %1020 = vmatprep.subr.bf16.mxu0 0
    %1021 = vmatpush1.bf16.msra.mxu0 %v993
    %1022 = vmatprep.subr.bf16.mxu0 0
    %1023 = vmatpush1.bf16.msra.mxu0 %v992
    %1024 = vmatprep.subr.bf16.mxu0 0
    %1025 = vmatpush2.bf16.msra.mxu0 0
    %1026 = vmatprep.subr.bf16.mxu0 0
    %1027 = vmatpush2.bf16.msra.mxu0 0
    %1028 = vmatprep.subr.bf16.mxu0 0
    %1029 = vmatpush2.bf16.msra.mxu0 0
    %1030 = vmatprep.subr.bf16.mxu0 0
    %1031 = vmatpush2.bf16.msra.mxu0 0
    %1032 = vmatprep.subr.bf16.mxu0 0
    %1033 = vmatpush2.bf16.msra.mxu0 0
    %1034 = vmatprep.subr.bf16.mxu0 0
    %1035 = vmatpush2.bf16.msra.mxu0 0
    %1036 = vmatprep.subr.bf16.mxu0 0
    %1037 = vmatpush2.bf16.msra.mxu0 0
    %1038 = vmatprep.subr.bf16.mxu0 0
    %1039 = vmatpush2.bf16.msra.mxu0 0
    %1040 = vmatprep.mubr.bf16.mxu0 0
    %1041 = vmatmul.mubr.bf16.gmra.mxu0 %v936
    %v1042 = vpop.f32.mrf.mxu0
    %v1043 = vadd.f32 %v958, %v1042
    %v1044 = vpop.f32.mrf.mxu0
    %v1045 = vpop.f32.mrf.mxu0
    %v1046 = vpop.f32.mrf.mxu0
    %1047 = vdwg.mxu0
    %1048 = vst [vmem:[#allocation11] sm:$0xff] %v1043
    // Predicated region
    $region50: #{tpu_custom_call.1} parent=1 // pred_check
      _
    $region51: #{tpu_custom_call.1} parent=1 // pred_check_branch
      %1050 = sbr.rel (0) target = $region53
    $region52: #{tpu_custom_call.1} parent=1 // pred_region
      %s1052 = ssub.s32 128, 128
      %1053 = vsyncadd [#allocation4], %s1052
      %s1055 = sshll.u32 [#allocation11], 4
      %s1056 = int_to_ptr.vmem [resolvable:$true] %s1055
      %1058 = dma.vmem_to_hbm [thread:$0]  %s1056, 128, %s7, [#allocation4]
    $region53: #{tpu_custom_call.1} parent=1 // pred_fallthru
      _
    // Predicated region
    $region54: #{tpu_custom_call.1} parent=1 // pred_check
      _
    $region55: #{tpu_custom_call.1} parent=1 // pred_check_branch
      %1060 = sbr.rel (0) target = $region57
    $region56: #{tpu_custom_call.1} parent=1 // pred_region
      %1061 = dma.done [#allocation4], 128
    $region57: #{tpu_custom_call.1} parent=1 // pred_fallthru
      _
    %1062 = vsyncpa [#allocation3], 1
    %1063 = vsyncpa [#allocation6], 1
    %1064 = vsyncpa [#allocation9], 1
    %1065 = vsyncpa [#allocation4], 1

</llo_original>
